<compile_context>
chip_gen: v6e
topology: v6e:2x2x1
jax: 0.10.0
libtpu: 0.0.40
codegen_flags: <defaults>
</compile_context>

<pallas_src>
import functools

import jax
import jax.numpy as jnp
from jax.experimental import pallas as pl
from jax.experimental.pallas import tpu as pltpu

_LANE = 128
_EPS = 1e-12


def _round_up(x, m):
    return (x + m - 1) // m * m


def _pick_tile(n, target, granule):
    """Largest multiple of `granule` <= min(target, n) that divides n."""
    t = min(target, n)
    t = max(granule, (t // granule) * granule)
    while n % t:
        t -= granule
    return t


def _sage_layer_kernel(a_ref, xk_ref, xi_ref, wl_ref, wr_ref, b_ref, o_ref,
                       acc_ref, *, apply_relu):
    k = pl.program_id(1)            # source-node (reduction) tile
    nk = pl.num_programs(1)

    @pl.when(k == 0)
    def _init():
        acc_ref[...] = jnp.zeros_like(acc_ref)

    # Neighbor-sum aggregation: int8 (0/1) adjacency cast to bf16 in-register,
    # bf16 source features, f32 accumulation on the MXU.
    acc_ref[...] += jnp.dot(a_ref[...].astype(jnp.bfloat16), xk_ref[...],
                            preferred_element_type=jnp.float32)

    @pl.when(k == nk - 1)
    def _epilogue():
        # lin_l(agg) + lin_r(x_root), both in f32 (runs once per row tile).
        agg = acc_ref[...]                                   # (tm, c_in_pad) f32
        x_root = xi_ref[...].astype(jnp.float32)             # (tm, c_in_pad) f32
        out = (jnp.dot(agg, wl_ref[...], preferred_element_type=jnp.float32)
               + jnp.dot(x_root, wr_ref[...], preferred_element_type=jnp.float32)
               + b_ref[...])
        # F.normalize(out, p=2, dim=-1, eps=1e-12):  out / max(||out||, eps)
        ss = jnp.sum(out * out, axis=-1, keepdims=True)
        inv = jnp.minimum(jax.lax.rsqrt(ss), 1.0 / _EPS)
        out = out * inv
        if apply_relu:
            out = jnp.maximum(out, 0.0)
        o_ref[...] = out.astype(o_ref.dtype)


def _layer_vmem_bytes(tm, tk, c_in_pad, c_out_pad):
    """Rough VMEM need incl. double-buffered pipeline inputs/outputs."""
    adj = tm * tk * 1 * 2                 # int8, 2 buffers
    xk = tk * c_in_pad * 2 * 2            # bf16, 2 buffers
    xi = tm * c_in_pad * 2 * 2            # bf16, 2 buffers
    w = 2 * c_in_pad * c_out_pad * 4 * 2  # two f32 weights, 2 buffers
    bias = c_out_pad * 4 * 2
    out = tm * c_out_pad * 4 * 2          # <= f32, 2 buffers
    acc = tm * c_in_pad * 4               # scratch
    return adj + xk + xi + w + bias + out + acc


def sage_layer(adj_i8, x_pad_bf16, w_l, w_r, b_pad, *, apply_relu, out_dtype,
               tm, tk):
    """One SAGEConv layer (+ optional ReLU) as a single pallas_call.

    adj_i8:     (N, N) int8 0/1 adjacency (adj_t, row = target).
    x_pad_bf16: (N, c_in_pad) bf16 node features (channels padded to 128).
    w_l, w_r:   (c_in_pad, c_out_pad) f32 weights (lin_l / lin_r).
    b_pad:      (1, c_out_pad) f32 bias of lin_l (zero in padded columns).
    """
    N, c_in_pad = x_pad_bf16.shape
    c_out_pad = w_l.shape[1]
    assert adj_i8.shape == (N, N)
    assert N % tm == 0 and N % tk == 0
    assert tm % 32 == 0 and tk % _LANE == 0
    assert c_in_pad % _LANE == 0 and c_out_pad % _LANE == 0

    need = _layer_vmem_bytes(tm, tk, c_in_pad, c_out_pad)
    vmem_limit = int(min(max(2 * need, 32 * 1024 * 1024), 48 * 1024 * 1024))

    kernel = functools.partial(_sage_layer_kernel, apply_relu=apply_relu)
    return pl.pallas_call(
        kernel,
        out_shape=jax.ShapeDtypeStruct((N, c_out_pad), out_dtype),
        grid_spec=pltpu.PrefetchScalarGridSpec(
            num_scalar_prefetch=0,
            grid=(N // tm, N // tk),              # (row tiles, reduction tiles)
            in_specs=[
                pl.BlockSpec((tm, tk), lambda i, k: (i, k)),               # adj
                pl.BlockSpec((tk, c_in_pad), lambda i, k: (k, 0)),         # X src
                pl.BlockSpec((tm, c_in_pad), lambda i, k: (i, 0)),         # X root
                pl.BlockSpec((c_in_pad, c_out_pad), lambda i, k: (0, 0)),  # W_l
                pl.BlockSpec((c_in_pad, c_out_pad), lambda i, k: (0, 0)),  # W_r
                pl.BlockSpec((1, c_out_pad), lambda i, k: (0, 0)),         # bias
            ],
            out_specs=pl.BlockSpec((tm, c_out_pad), lambda i, k: (i, 0)),
            scratch_shapes=[pltpu.VMEM((tm, c_in_pad), jnp.float32)],
        ),
        compiler_params=pltpu.CompilerParams(
            dimension_semantics=("parallel", "arbitrary"),
            vmem_limit_bytes=vmem_limit),
    )(adj_i8, x_pad_bf16, x_pad_bf16, w_l, w_r, b_pad)


def init_sage_params(key, in_channels, hidden_channels, out_channels,
                     num_layers):
    """Deterministic synthetic parameters; shapes match PyG SAGEConv
    (lin_l: bias=True, lin_r: bias=False)."""
    dims = [in_channels] + [hidden_channels] * (num_layers - 1) + [out_channels]
    params = []
    for layer in range(num_layers):
        d_in, d_out = dims[layer], dims[layer + 1]
        key, k1, k2 = jax.random.split(key, 3)
        scale = 1.0 / jnp.sqrt(jnp.float32(d_in))
        w_l = jax.random.normal(k1, (d_in, d_out), jnp.float32) * scale
        w_r = jax.random.normal(k2, (d_in, d_out), jnp.float32) * scale
        b = jnp.zeros((d_out,), jnp.float32)
        params.append((w_l, w_r, b))
    return params


def _pad_params(params):
    """Zero-pad channel dims to multiples of 128; keep weights in f32."""
    packed = []
    for (w_l, w_r, b) in params:
        d_in, d_out = w_l.shape
        d_in_p = _round_up(d_in, _LANE)
        d_out_p = _round_up(d_out, _LANE)
        wl_p = jnp.zeros((d_in_p, d_out_p), jnp.float32).at[:d_in, :d_out].set(w_l)
        wr_p = jnp.zeros((d_in_p, d_out_p), jnp.float32).at[:d_in, :d_out].set(w_r)
        b_p = jnp.zeros((1, d_out_p), jnp.float32).at[0, :d_out].set(b)
        packed.append((wl_p, wr_p, b_p))
    return packed


def sage_forward(x, adj, params, *, tm=None, tk=None):
    """Full SAGE forward (eval mode).

    x:   (N, in_channels) f32 node features.
    adj: (N, N) f32/boolean 0/1 adjacency (adj_t).
    """
    N, c_in = x.shape
    N_pad = _round_up(N, _LANE)

    # Tile selection: big blocks to amortize per-step overhead; keep at least
    # 2 row tiles when possible so v7x's two TensorCores both get work.
    if tm is None:
        tm = _pick_tile(N_pad, max(_LANE, min(512, N_pad // 2)), 32)
    if tk is None:
        tk = _pick_tile(N_pad, 1024, _LANE)

    # 0/1 adjacency -> int8 in HBM (exact), cast to bf16 inside the kernel.
    adj_i8 = jnp.zeros((N_pad, N_pad), jnp.int8).at[:N, :N].set(
        adj.astype(jnp.int8))

    packed = _pad_params(params)
    c_in_p0 = packed[0][0].shape[0]
    h = jnp.zeros((N_pad, c_in_p0), jnp.bfloat16).at[:N, :c_in].set(
        x.astype(jnp.bfloat16))

    num_layers = len(params)
    out_channels = params[-1][0].shape[1]
    for layer, (wl_p, wr_p, b_p) in enumerate(packed):
        is_last = layer == num_layers - 1
        out_dtype = jnp.float32 if is_last else jnp.bfloat16
        h = sage_layer(adj_i8, h, wl_p, wr_p, b_p,
                       apply_relu=not is_last, out_dtype=out_dtype,
                       tm=tm, tk=tk)
        # F.dropout(..., training=False) -> identity (eval mode).
    return h[:N, :out_channels]


if __name__ == "__main__":
    N = 128                # number of nodes
    in_channels = 32
    hidden_channels = 32
    out_channels = 16
    num_layers = 3
    dropout = 0.5          # unused in eval mode

    key = jax.random.PRNGKey(0)
    kx, ka, kp = jax.random.split(key, 3)

    x = jax.random.normal(kx, (N, in_channels), jnp.float32)
    # Random sparse-ish dense 0/1 adjacency (adj_t), ~10% edge density.
    adj = (jax.random.uniform(ka, (N, N)) < 0.1).astype(jnp.float32)

    params = init_sage_params(kp, in_channels, hidden_channels, out_channels,
                              num_layers)

    out = sage_forward(x, adj, params)
    jax.block_until_ready(out)
    assert out.shape == (N, out_channels)
    print("KERNEL_OK")
</pallas_src>

<mosaic_0001>
module attributes {stable_mosaic.version = 11 : i64} {
  func.func @_sage_layer_kernel(%arg0: i32, %arg1: i32, %arg2: memref<128x128xi8, #tpu.memory_space<vmem>>, %arg3: memref<128x128xbf16, #tpu.memory_space<vmem>>, %arg4: memref<128x128xbf16, #tpu.memory_space<vmem>>, %arg5: memref<128x128xf32, #tpu.memory_space<vmem>>, %arg6: memref<128x128xf32, #tpu.memory_space<vmem>>, %arg7: memref<1x128xf32, #tpu.memory_space<vmem>>, %arg8: memref<128x128xbf16, #tpu.memory_space<vmem>>, %arg9: memref<128x128xf32, #tpu.memory_space<vmem>>) attributes {dimension_semantics = [#tpu.dimension_semantics<parallel>, #tpu.dimension_semantics<arbitrary>], iteration_bounds = array<i64: 1, 1>, scalar_prefetch = 0 : i64, scratch_operands = 1 : i64, tpu.core_type = #tpu.core_type<tc>, window_params = [{transform_indices = @transform_0, window_bounds = array<i64: 128, 128>}, {transform_indices = @transform_1, window_bounds = array<i64: 128, 128>}, {transform_indices = @transform_2, window_bounds = array<i64: 128, 128>}, {pipeline_mode = #tpu.pipeline_mode<synchronous>, transform_indices = @transform_3, window_bounds = array<i64: 128, 128>}, {pipeline_mode = #tpu.pipeline_mode<synchronous>, transform_indices = @transform_4, window_bounds = array<i64: 128, 128>}, {pipeline_mode = #tpu.pipeline_mode<synchronous>, transform_indices = @transform_5, window_bounds = array<i64: 1, 128>}, {transform_indices = @transform_6, window_bounds = array<i64: 128, 128>}]} {
    %c0_i32 = arith.constant 0 : i32
    %0 = arith.cmpi eq, %arg1, %c0_i32 : i32
    %1 = arith.extui %0 : i1 to i32
    %c0_i32_0 = arith.constant 0 : i32
    %2 = arith.cmpi ne, %1, %c0_i32_0 : i32
    scf.if %2 {
      %cst_10 = arith.constant 0.000000e+00 : f32
      %13 = vector.broadcast %cst_10 : f32 to vector<128x128xf32>
      %c0_11 = arith.constant 0 : index
      %c0_12 = arith.constant 0 : index
      %14 = vector.load %arg9[%c0_11, %c0_12] : memref<128x128xf32, #tpu.memory_space<vmem>>, vector<128x128xf32>
      tpu.vector_store %arg9[%c0_11, %c0_12], %13 {strides = array<i32>} : memref<128x128xf32, #tpu.memory_space<vmem>>, vector<128x128xf32>,
    } else {
    }
    %c0 = arith.constant 0 : index
    %c0_1 = arith.constant 0 : index
    %3 = vector.load %arg9[%c0, %c0_1] : memref<128x128xf32, #tpu.memory_space<vmem>>, vector<128x128xf32>
    %c0_2 = arith.constant 0 : index
    %c0_3 = arith.constant 0 : index
    %4 = vector.load %arg2[%c0_2, %c0_3] : memref<128x128xi8, #tpu.memory_space<vmem>>, vector<128x128xi8>
    %5 = arith.sitofp %4 : vector<128x128xi8> to vector<128x128xbf16>
    %c0_4 = arith.constant 0 : index
    %c0_5 = arith.constant 0 : index
    %6 = vector.load %arg3[%c0_4, %c0_5] : memref<128x128xbf16, #tpu.memory_space<vmem>>, vector<128x128xbf16>
    %cst = arith.constant dense<0.000000e+00> : vector<128x128xf32>
    %7 = tpu.matmul %5, %6, %cst {dimension_numbers = #tpu.dot_dimension_numbers<[1], [0], [0], [1], [0, 0, 1, 1], [], []>} : vector<128x128xbf16>, vector<128x128xbf16>, vector<128x128xf32> -> vector<128x128xf32>
    %8 = arith.addf %3, %7 : vector<128x128xf32>
    %c0_6 = arith.constant 0 : index
    %c0_7 = arith.constant 0 : index
    %9 = vector.load %arg9[%c0_6, %c0_7] : memref<128x128xf32, #tpu.memory_space<vmem>>, vector<128x128xf32>
    tpu.vector_store %arg9[%c0_6, %c0_7], %8 {strides = array<i32>} : memref<128x128xf32, #tpu.memory_space<vmem>>, vector<128x128xf32>,
    %c0_i32_8 = arith.constant 0 : i32
    %10 = arith.cmpi eq, %arg1, %c0_i32_8 : i32
    %11 = arith.extui %10 : i1 to i32
    %c0_i32_9 = arith.constant 0 : i32
    %12 = arith.cmpi ne, %11, %c0_i32_9 : i32
    scf.if %12 {
      %c0_10 = arith.constant 0 : index
      %c0_11 = arith.constant 0 : index
      %13 = vector.load %arg9[%c0_10, %c0_11] : memref<128x128xf32, #tpu.memory_space<vmem>>, vector<128x128xf32>
      %c0_12 = arith.constant 0 : index
      %c0_13 = arith.constant 0 : index
      %14 = vector.load %arg4[%c0_12, %c0_13] : memref<128x128xbf16, #tpu.memory_space<vmem>>, vector<128x128xbf16>
      %15 = arith.extf %14 : vector<128x128xbf16> to vector<128x128xf32>
      %c0_14 = arith.constant 0 : index
      %c0_15 = arith.constant 0 : index
      %16 = vector.load %arg5[%c0_14, %c0_15] : memref<128x128xf32, #tpu.memory_space<vmem>>, vector<128x128xf32>
      %cst_16 = arith.constant dense<0.000000e+00> : vector<128x128xf32>
      %17 = tpu.matmul %13, %16, %cst_16 {dimension_numbers = #tpu.dot_dimension_numbers<[1], [0], [0], [1], [0, 0, 1, 1], [], []>} : vector<128x128xf32>, vector<128x128xf32>, vector<128x128xf32> -> vector<128x128xf32>
      %c0_17 = arith.constant 0 : index
      %c0_18 = arith.constant 0 : index
      %18 = vector.load %arg6[%c0_17, %c0_18] : memref<128x128xf32, #tpu.memory_space<vmem>>, vector<128x128xf32>
      %cst_19 = arith.constant dense<0.000000e+00> : vector<128x128xf32>
      %19 = tpu.matmul %15, %18, %cst_19 {dimension_numbers = #tpu.dot_dimension_numbers<[1], [0], [0], [1], [0, 0, 1, 1], [], []>} : vector<128x128xf32>, vector<128x128xf32>, vector<128x128xf32> -> vector<128x128xf32>
      %20 = arith.addf %17, %19 : vector<128x128xf32>
      %c0_20 = arith.constant 0 : index
      %c0_21 = arith.constant 0 : index
      %21 = vector.load %arg7[%c0_20, %c0_21] : memref<1x128xf32, #tpu.memory_space<vmem>>, vector<1x128xf32>
      %22 = vector.broadcast %21 : vector<1x128xf32> to vector<128x128xf32>
      %23 = arith.addf %20, %22 : vector<128x128xf32>
      %24 = arith.mulf %23, %23 : vector<128x128xf32>
      %cst_22 = arith.constant dense<0.000000e+00> : vector<128xf32>
      %25 = vector.multi_reduction <add>, %24, %cst_22 [1] : vector<128x128xf32> to vector<128xf32>
      %26 = vector.shape_cast %25 : vector<128xf32> to vector<128x1xf32>
      %27 = math.rsqrt %26 : vector<128x1xf32>
      %cst_23 = arith.constant 9.99999995E+11 : f32
      %28 = vector.broadcast %cst_23 : f32 to vector<128x1xf32>
      %29 = arith.minimumf %27, %28 : vector<128x1xf32>
      %30 = vector.broadcast %29 : vector<128x1xf32> to vector<128x128xf32>
      %31 = arith.mulf %23, %30 : vector<128x128xf32>
      %cst_24 = arith.constant 0.000000e+00 : f32
      %32 = vector.broadcast %cst_24 : f32 to vector<128x128xf32>
      %33 = arith.maximumf %31, %32 : vector<128x128xf32>
      %34 = arith.truncf %33 : vector<128x128xf32> to vector<128x128xbf16>
      %c0_25 = arith.constant 0 : index
      %c0_26 = arith.constant 0 : index
      %35 = vector.load %arg8[%c0_25, %c0_26] : memref<128x128xbf16, #tpu.memory_space<vmem>>, vector<128x128xbf16>
      tpu.vector_store %arg8[%c0_25, %c0_26], %34 {strides = array<i32>} : memref<128x128xbf16, #tpu.memory_space<vmem>>, vector<128x128xbf16>,
    } else {
    }
    return
  }
  func.func @transform_0(%arg0: i32, %arg1: i32) -> (i32, i32) {
    %c0_i32 = arith.constant 0 : i32
    return %arg0, %arg1 : i32, i32
  }
  func.func @transform_1(%arg0: i32, %arg1: i32) -> (i32, i32) {
    %c0_i32 = arith.constant 0 : i32
    %c0_i32_0 = arith.constant 0 : i32
    return %arg1, %c0_i32 : i32, i32
  }
  func.func @transform_2(%arg0: i32, %arg1: i32) -> (i32, i32) {
    %c0_i32 = arith.constant 0 : i32
    %c0_i32_0 = arith.constant 0 : i32
    return %arg0, %c0_i32 : i32, i32
  }
  func.func @transform_3(%arg0: i32, %arg1: i32) -> (i32, i32) {
    %c0_i32 = arith.constant 0 : i32
    %c0_i32_0 = arith.constant 0 : i32
    %c0_i32_1 = arith.constant 0 : i32
    return %c0_i32, %c0_i32_0 : i32, i32
  }
  func.func @transform_4(%arg0: i32, %arg1: i32) -> (i32, i32) {
    %c0_i32 = arith.constant 0 : i32
    %c0_i32_0 = arith.constant 0 : i32
    %c0_i32_1 = arith.constant 0 : i32
    return %c0_i32, %c0_i32_0 : i32, i32
  }
  func.func @transform_5(%arg0: i32, %arg1: i32) -> (i32, i32) {
    %c0_i32 = arith.constant 0 : i32
    %c0_i32_0 = arith.constant 0 : i32
    %c0_i32_1 = arith.constant 0 : i32
    return %c0_i32, %c0_i32_0 : i32, i32
  }
  func.func @transform_6(%arg0: i32, %arg1: i32) -> (i32, i32) {
    %c0_i32 = arith.constant 0 : i32
    %c0_i32_0 = arith.constant 0 : i32
    return %arg0, %c0_i32 : i32, i32
  }
}

</mosaic_0001>

<llo_original>
// kernel: tpu_custom_call.1
$region0: #{tpu_custom_call.1}
  #allocation0 [shape = 'u32[]', space=smem, size = 0x4, offset = 0x4, fixed_abs, tag = 'smem constant byte address 0x4 - core index']
  #allocation1 [shape = 'u32[144,128]{1,0:T(1,128)}', space=vmem, size = 0x12000, scoped, tag = 'internal scratch']
  #allocation2 [shape = 'f32[128,128]{1,0:T(8,128)}', space=vmem, size = 0x10000, scoped, tag = 'scratch operand']
  %s0 = inlined_call_operand.hbm [shape: s8[128,128], index: 0, kind: input, shape index: {}]
  %s1 = inlined_call_operand.hbm [shape: bf16[128,128], index: 1, kind: input, shape index: {}]
  %s2 = inlined_call_operand.hbm [shape: bf16[128,128], index: 2, kind: input, shape index: {}]
  %s3 = inlined_call_operand.hbm [shape: f32[128,128], index: 3, kind: input, shape index: {}]
  %s4 = inlined_call_operand.hbm [shape: f32[128,128], index: 4, kind: input, shape index: {}]
  %s5 = inlined_call_operand.vmem [shape: f32[1,128], index: 5, kind: input, shape index: {}]
  %s6 = inlined_call_operand.hbm [shape: bf16[128,128], index: 6, kind: output, shape index: {}]
  %s7 = sld [smem:[#allocation0]]
  $region62: #{tpu_custom_call.1} parent=0
    _
  %s9 = ssub.s32 1, %s7
  %s10 = scalar_select 0, %s9, %s7
  $region1: #{tpu_custom_call.1} parent=0
    #allocation3 [shape = 'u8[16384]{0}', space=vmem, size = 0x4000, scoped, tag = 'input window, operand 0, single buffered']
    #allocation4 [shape = 's32[1]{0}', space=sflag, size = 0x4, scoped, tag = 'scoped memory for tpu_custom_call.1']
    #allocation5 [shape = 's32[1]{0}', space=sflag, size = 0x4, scoped, tag = 'scoped memory for tpu_custom_call.1']
    #allocation6 [shape = 'u8[32768]{0}', space=vmem, size = 0x8000, scoped, tag = 'input window, operand 1, single buffered']
    #allocation7 [shape = 's32[1]{0}', space=sflag, size = 0x4, scoped, tag = 'scoped memory for tpu_custom_call.1']
    #allocation8 [shape = 'u8[32768]{0}', space=vmem, size = 0x8000, scoped, tag = 'input window, operand 2, single buffered']
    #allocation9 [shape = 'u8[65536]{0}', space=vmem, size = 0x10000, scoped, tag = 'input window, operand 3, single buffered']
    #allocation10 [shape = 's32[1]{0}', space=sflag, size = 0x4, scoped, tag = 'scoped memory for tpu_custom_call.1']
    #allocation11 [shape = 'u8[65536]{0}', space=vmem, size = 0x10000, scoped, tag = 'input window, operand 4, single buffered']
    #allocation12 [shape = 'u8[32768]{0}', space=vmem, size = 0x8000, scoped, tag = 'output window, operand 0, single buffered']
    %11 = vsyncpa [#allocation4], 0
    %12 = vsyncpa [#allocation7], 0
    %13 = vsyncpa [#allocation10], 0
    %14 = vsyncpa [#allocation5], 0
    // Predicated region
    $region2: #{tpu_custom_call.1} parent=1 // pred_check
      _
    $region3: #{tpu_custom_call.1} parent=1 // pred_check_branch
      %16 = sbr.rel (0) target = $region5
    $region4: #{tpu_custom_call.1} parent=1 // pred_region
      %s18 = ssub.s32 512, 512
      %19 = vsyncadd [#allocation4], %s18
      %s20 = sshll.u32 [#allocation3], 4
      %s21 = int_to_ptr.vmem [resolvable:$true] %s20
      %26 = dma.hbm_to_vmem [thread:$0]  %s0, 512, %s21, [#allocation4], 128, 128, 8
    $region5: #{tpu_custom_call.1} parent=1 // pred_fallthru
      _
    // Predicated region
    $region6: #{tpu_custom_call.1} parent=1 // pred_check
      _
    $region7: #{tpu_custom_call.1} parent=1 // pred_check_branch
      %28 = sbr.rel (0) target = $region9
    $region8: #{tpu_custom_call.1} parent=1 // pred_region
      %s30 = ssub.s32 1024, 1024
      %31 = vsyncadd [#allocation7], %s30
      %s32 = sshll.u32 [#allocation6], 4
      %s33 = int_to_ptr.vmem [resolvable:$true] %s32
      %38 = dma.hbm_to_vmem [thread:$0]  %s1, 1024, %s33, [#allocation7], 64, 64, 4
    $region9: #{tpu_custom_call.1} parent=1 // pred_fallthru
      _
    // Predicated region
    $region10: #{tpu_custom_call.1} parent=1 // pred_check
      _
    $region11: #{tpu_custom_call.1} parent=1 // pred_check_branch
      %40 = sbr.rel (0) target = $region13
    $region12: #{tpu_custom_call.1} parent=1 // pred_region
      %s42 = ssub.s32 1024, 1024
      %43 = vsyncadd [#allocation7], %s42
      %s44 = sshll.u32 [#allocation8], 4
      %s45 = int_to_ptr.vmem [resolvable:$true] %s44
      %50 = dma.hbm_to_vmem [thread:$0]  %s2, 1024, %s45, [#allocation7], 64, 64, 4
    $region13: #{tpu_custom_call.1} parent=1 // pred_fallthru
      _
    // Predicated region
    $region14: #{tpu_custom_call.1} parent=1 // pred_check
      _
    $region15: #{tpu_custom_call.1} parent=1 // pred_check_branch
      %52 = sbr.rel (0) target = $region17
    $region16: #{tpu_custom_call.1} parent=1 // pred_region
      %s54 = ssub.s32 2048, 2048
      %55 = vsyncadd [#allocation10], %s54
      %s56 = sshll.u32 [#allocation9], 4
      %s57 = int_to_ptr.vmem [resolvable:$true] %s56
      %62 = dma.hbm_to_vmem [thread:$0]  %s3, 2048, %s57, [#allocation10], 128, 128, 8
    $region17: #{tpu_custom_call.1} parent=1 // pred_fallthru
      _
    // Predicated region
    $region18: #{tpu_custom_call.1} parent=1 // pred_check
      _
    $region19: #{tpu_custom_call.1} parent=1 // pred_check_branch
      %64 = sbr.rel (0) target = $region21
    $region20: #{tpu_custom_call.1} parent=1 // pred_region
      %s66 = ssub.s32 2048, 2048
      %67 = vsyncadd [#allocation10], %s66
      %s68 = sshll.u32 [#allocation11], 4
      %s69 = int_to_ptr.vmem [resolvable:$true] %s68
      %74 = dma.hbm_to_vmem [thread:$0]  %s4, 2048, %s69, [#allocation10], 128, 128, 8
    $region21: #{tpu_custom_call.1} parent=1 // pred_fallthru
      _
    // Predicated region
    $region22: #{tpu_custom_call.1} parent=1 // pred_check
      _
    $region23: #{tpu_custom_call.1} parent=1 // pred_check_branch
      %76 = sbr.rel (0) target = $region25
    $region24: #{tpu_custom_call.1} parent=1 // pred_region
      _
    $region25: #{tpu_custom_call.1} parent=1 // pred_fallthru
      _
    // Predicated region
    $region26: #{tpu_custom_call.1} parent=1 // pred_check
      _
    $region27: #{tpu_custom_call.1} parent=1 // pred_check_branch
      %78 = sbr.rel (0) target = $region29
    $region28: #{tpu_custom_call.1} parent=1 // pred_region
      %79 = dma.done [#allocation4], 512
    $region29: #{tpu_custom_call.1} parent=1 // pred_fallthru
      _
    // Predicated region
    $region30: #{tpu_custom_call.1} parent=1 // pred_check
      _
    $region31: #{tpu_custom_call.1} parent=1 // pred_check_branch
      %81 = sbr.rel (0) target = $region33
    $region32: #{tpu_custom_call.1} parent=1 // pred_region
      %82 = dma.done [#allocation7], 1024
    $region33: #{tpu_custom_call.1} parent=1 // pred_fallthru
      _
    // Predicated region
    $region34: #{tpu_custom_call.1} parent=1 // pred_check
      _
    $region35: #{tpu_custom_call.1} parent=1 // pred_check_branch
      %84 = sbr.rel (0) target = $region37
    $region36: #{tpu_custom_call.1} parent=1 // pred_region
      %85 = dma.done [#allocation7], 1024
    $region37: #{tpu_custom_call.1} parent=1 // pred_fallthru
      _
    // Predicated region
    $region38: #{tpu_custom_call.1} parent=1 // pred_check
      _
    $region39: #{tpu_custom_call.1} parent=1 // pred_check_branch
      %87 = sbr.rel (0) target = $region41
    $region40: #{tpu_custom_call.1} parent=1 // pred_region
      %88 = dma.done [#allocation10], 2048
    $region41: #{tpu_custom_call.1} parent=1 // pred_fallthru
      _
    // Predicated region
    $region42: #{tpu_custom_call.1} parent=1 // pred_check
      _
    $region43: #{tpu_custom_call.1} parent=1 // pred_check_branch
      %90 = sbr.rel (0) target = $region45
    $region44: #{tpu_custom_call.1} parent=1 // pred_region
      %91 = dma.done [#allocation10], 2048
    $region45: #{tpu_custom_call.1} parent=1 // pred_fallthru
      _
    %p93 = scmp.eq.s32.totalorder 0, 0
    // Predicated region
    $region46: #{tpu_custom_call.1} parent=1 // pred_check
      %p94 = pneg %p93
    $region47: #{tpu_custom_call.1} parent=1 // pred_check_branch
      %96 = sbr.rel (%p94) target = $region49
    $region48: #{tpu_custom_call.1} parent=1 // pred_region
      %97 = vst [vmem:[#allocation2] sm:$0xff] 0.0
      %98 = vst [vmem:[#allocation2 + $0x8] sm:$0xff] 0.0
      %99 = vst [vmem:[#allocation2 + $0x10] sm:$0xff] 0.0
      %100 = vst [vmem:[#allocation2 + $0x18] sm:$0xff] 0.0
      %101 = vst [vmem:[#allocation2 + $0x20] sm:$0xff] 0.0
      %102 = vst [vmem:[#allocation2 + $0x28] sm:$0xff] 0.0
      %103 = vst [vmem:[#allocation2 + $0x30] sm:$0xff] 0.0
      %104 = vst [vmem:[#allocation2 + $0x38] sm:$0xff] 0.0
      %105 = vst [vmem:[#allocation2 + $0x40] sm:$0xff] 0.0
      %106 = vst [vmem:[#allocation2 + $0x48] sm:$0xff] 0.0
      %107 = vst [vmem:[#allocation2 + $0x50] sm:$0xff] 0.0
      %108 = vst [vmem:[#allocation2 + $0x58] sm:$0xff] 0.0
      %109 = vst [vmem:[#allocation2 + $0x60] sm:$0xff] 0.0
      %110 = vst [vmem:[#allocation2 + $0x68] sm:$0xff] 0.0
      %111 = vst [vmem:[#allocation2 + $0x70] sm:$0xff] 0.0
      %112 = vst [vmem:[#allocation2 + $0x78] sm:$0xff] 0.0
    $region49: #{tpu_custom_call.1} parent=1 // pred_fallthru
      _
    %v113 = vld [vmem:[#allocation2] sm:$0xff]
    %v114 = vld [vmem:[#allocation2 + $0x8] sm:$0xff]
    %v115 = vld [vmem:[#allocation2 + $0x10] sm:$0xff]
    %v116 = vld [vmem:[#allocation2 + $0x18] sm:$0xff]
    %v117 = vld [vmem:[#allocation2 + $0x20] sm:$0xff]
    %v118 = vld [vmem:[#allocation2 + $0x28] sm:$0xff]
    %v119 = vld [vmem:[#allocation2 + $0x30] sm:$0xff]
    %v120 = vld [vmem:[#allocation2 + $0x38] sm:$0xff]
    %v121 = vld [vmem:[#allocation2 + $0x40] sm:$0xff]
    %v122 = vld [vmem:[#allocation2 + $0x48] sm:$0xff]
    %v123 = vld [vmem:[#allocation2 + $0x50] sm:$0xff]
    %v124 = vld [vmem:[#allocation2 + $0x58] sm:$0xff]
    %v125 = vld [vmem:[#allocation2 + $0x60] sm:$0xff]
    %v126 = vld [vmem:[#allocation2 + $0x68] sm:$0xff]
    %v127 = vld [vmem:[#allocation2 + $0x70] sm:$0xff]
    %v128 = vld [vmem:[#allocation2 + $0x78] sm:$0xff]
    %v129 = vld [vmem:[#allocation3] sm:$0xff]
    %v130 = vld [vmem:[#allocation3 + $0x8] sm:$0xff]
    %v131 = vld [vmem:[#allocation3 + $0x10] sm:$0xff]
    %v132 = vld [vmem:[#allocation3 + $0x18] sm:$0xff]
    %v133 = vunpack.c.l.s8.bf16 %v129
    %v134 = vunpack.c.h.s8.bf16 %v129
    %v135 = vunpack.c.l.s8.bf16 %v130
    %v136 = vunpack.c.h.s8.bf16 %v130
    %v137 = vunpack.c.l.s8.bf16 %v131
    %v138 = vunpack.c.h.s8.bf16 %v131
    %v139 = vunpack.c.l.s8.bf16 %v132
    %v140 = vunpack.c.h.s8.bf16 %v132
    %v141 = vld [vmem:[#allocation6] sm:$0xf]
    %v142 = vld [vmem:[#allocation6 + $0x4] sm:$0xf]
    %v143 = vld [vmem:[#allocation6 + $0x8] sm:$0xf]
    %v144 = vld [vmem:[#allocation6 + $0xc] sm:$0xf]
    %v145 = vld [vmem:[#allocation6 + $0x10] sm:$0xf]
    %v146 = vld [vmem:[#allocation6 + $0x14] sm:$0xf]
    %v147 = vld [vmem:[#allocation6 + $0x18] sm:$0xf]
    %v148 = vld [vmem:[#allocation6 + $0x1c] sm:$0xf]
    %v149 = vld [vmem:[#allocation6 + $0x20] sm:$0xf]
    %v150 = vld [vmem:[#allocation6 + $0x24] sm:$0xf]
    %v151 = vld [vmem:[#allocation6 + $0x28] sm:$0xf]
    %v152 = vld [vmem:[#allocation6 + $0x2c] sm:$0xf]
    %v153 = vld [vmem:[#allocation6 + $0x30] sm:$0xf]
    %v154 = vld [vmem:[#allocation6 + $0x34] sm:$0xf]
    %v155 = vld [vmem:[#allocation6 + $0x38] sm:$0xf]
    %v156 = vld [vmem:[#allocation6 + $0x3c] sm:$0xf]
    %v173 = vunpack.c.l.b16 %v141
    %v174 = vunpack.c.l.b16 %v142
    %v175 = vunpack.c.l.b16 %v143
    %v176 = vunpack.c.l.b16 %v144
    %v177 = vunpack.c.l.b16 %v145
    %v178 = vunpack.c.l.b16 %v146
    %v179 = vunpack.c.l.b16 %v147
    %v180 = vunpack.c.l.b16 %v148
    %v181 = vunpack.c.l.b16 %v149
    %v182 = vunpack.c.l.b16 %v150
    %v183 = vunpack.c.l.b16 %v151
    %v184 = vunpack.c.l.b16 %v152
    %v185 = vunpack.c.l.b16 %v153
    %v186 = vunpack.c.l.b16 %v154
    %v187 = vunpack.c.l.b16 %v155
    %v188 = vunpack.c.l.b16 %v156
    %v189 = vpack.c.b16 %v174, %v173
    %v190 = vpack.c.b16 %v176, %v175
    %v191 = vpack.c.b16 %v178, %v177
    %v192 = vpack.c.b16 %v180, %v179
    %v193 = vpack.c.b16 %v182, %v181
    %v194 = vpack.c.b16 %v184, %v183
    %v195 = vpack.c.b16 %v186, %v185
    %v196 = vpack.c.b16 %v188, %v187
    %205 = vmatprep.subr.bf16.mxu0 0
    %206 = vmatpush1.bf16.msra.mxu0 %v196
    %207 = vmatprep.subr.bf16.mxu0 0
    %208 = vmatpush1.bf16.msra.mxu0 %v195
    %209 = vmatprep.subr.bf16.mxu0 0
    %210 = vmatpush1.bf16.msra.mxu0 %v194
    %211 = vmatprep.subr.bf16.mxu0 0
    %212 = vmatpush1.bf16.msra.mxu0 %v193
    %213 = vmatprep.subr.bf16.mxu0 0
    %214 = vmatpush1.bf16.msra.mxu0 %v192
    %215 = vmatprep.subr.bf16.mxu0 0
    %216 = vmatpush1.bf16.msra.mxu0 %v191
    %217 = vmatprep.subr.bf16.mxu0 0
    %218 = vmatpush1.bf16.msra.mxu0 %v190
    %219 = vmatprep.subr.bf16.mxu0 0
    %220 = vmatpush1.bf16.msra.mxu0 %v189
    %221 = vmatprep.subr.bf16.mxu0 0
    %222 = vmatpush2.bf16.msra.mxu0 0
    %223 = vmatprep.subr.bf16.mxu0 0
    %224 = vmatpush2.bf16.msra.mxu0 0
    %225 = vmatprep.subr.bf16.mxu0 0
    %226 = vmatpush2.bf16.msra.mxu0 0
    %227 = vmatprep.subr.bf16.mxu0 0
    %228 = vmatpush2.bf16.msra.mxu0 0
    %229 = vmatprep.subr.bf16.mxu0 0
    %230 = vmatpush2.bf16.msra.mxu0 0
    %231 = vmatprep.subr.bf16.mxu0 0
    %232 = vmatpush2.bf16.msra.mxu0 0
    %233 = vmatprep.subr.bf16.mxu0 0
    %234 = vmatpush2.bf16.msra.mxu0 0
    %235 = vmatprep.subr.bf16.mxu0 0
    %236 = vmatpush2.bf16.msra.mxu0 0
    %237 = vmatprep.mubr.bf16.mxu0 0
    %238 = vmatmul.mubr.bf16.gmra.mxu0 %v133
    %v239 = vpop.f32.mrf.mxu0
    %v240 = vadd.f32 0.0, %v239
    %v241 = vpop.f32.mrf.mxu0
    %v242 = vpop.f32.mrf.mxu0
    %v243 = vadd.f32 0.0, %v242
    %v244 = vpop.f32.mrf.mxu0
    %245 = vmatprep.mubr.bf16.mxu0 0
    %246 = vmatmul.mubr.bf16.gmra.mxu0 %v134
    %v247 = vpop.f32.mrf.mxu0
    %v248 = vadd.f32 0.0, %v247
    %v249 = vpop.f32.mrf.mxu0
    %v250 = vpop.f32.mrf.mxu0
    %v251 = vadd.f32 0.0, %v250
    %v252 = vpop.f32.mrf.mxu0
    %253 = vmatprep.mubr.bf16.mxu0 0
    %254 = vmatmul.mubr.bf16.gmra.mxu0 %v135
    %v255 = vpop.f32.mrf.mxu0
    %v256 = vadd.f32 0.0, %v255
    %v257 = vpop.f32.mrf.mxu0
    %v258 = vpop.f32.mrf.mxu0
    %v259 = vadd.f32 0.0, %v258
    %v260 = vpop.f32.mrf.mxu0
    %261 = vmatprep.mubr.bf16.mxu0 0
    %262 = vmatmul.mubr.bf16.gmra.mxu0 %v136
    %v263 = vpop.f32.mrf.mxu0
    %v264 = vadd.f32 0.0, %v263
    %v265 = vpop.f32.mrf.mxu0
    %v266 = vpop.f32.mrf.mxu0
    %v267 = vadd.f32 0.0, %v266
    %v268 = vpop.f32.mrf.mxu0
    %269 = vmatprep.mubr.bf16.mxu0 0
    %270 = vmatmul.mubr.bf16.gmra.mxu0 %v137
    %v271 = vpop.f32.mrf.mxu0
    %v272 = vadd.f32 0.0, %v271
    %v273 = vpop.f32.mrf.mxu0
    %v274 = vpop.f32.mrf.mxu0
    %v275 = vadd.f32 0.0, %v274
    %v276 = vpop.f32.mrf.mxu0
    %277 = vmatprep.mubr.bf16.mxu0 0
    %278 = vmatmul.mubr.bf16.gmra.mxu0 %v138
    %v279 = vpop.f32.mrf.mxu0
    %v280 = vadd.f32 0.0, %v279
    %v281 = vpop.f32.mrf.mxu0
    %v282 = vpop.f32.mrf.mxu0
    %v283 = vadd.f32 0.0, %v282
    %v284 = vpop.f32.mrf.mxu0
    %285 = vmatprep.mubr.bf16.mxu0 0
    %286 = vmatmul.mubr.bf16.gmra.mxu0 %v139
    %v287 = vpop.f32.mrf.mxu0
    %v288 = vadd.f32 0.0, %v287
    %v289 = vpop.f32.mrf.mxu0
    %v290 = vpop.f32.mrf.mxu0
    %v291 = vadd.f32 0.0, %v290
    %v292 = vpop.f32.mrf.mxu0
    %293 = vmatprep.mubr.bf16.mxu0 0
    %294 = vmatmul.mubr.bf16.gmra.mxu0 %v140
    %v295 = vpop.f32.mrf.mxu0
    %v296 = vadd.f32 0.0, %v295
    %v297 = vpop.f32.mrf.mxu0
    %v298 = vpop.f32.mrf.mxu0
    %v299 = vadd.f32 0.0, %v298
    %v300 = vpop.f32.mrf.mxu0
    %301 = vdwg.mxu0
    %v302 = vadd.f32 %v113, %v240
    %v303 = vadd.f32 %v114, %v243
    %v304 = vadd.f32 %v115, %v248
    %v305 = vadd.f32 %v116, %v251
    %v306 = vadd.f32 %v117, %v256
    %v307 = vadd.f32 %v118, %v259
    %v308 = vadd.f32 %v119, %v264
    %v309 = vadd.f32 %v120, %v267
    %v310 = vadd.f32 %v121, %v272
    %v311 = vadd.f32 %v122, %v275
    %v312 = vadd.f32 %v123, %v280
    %v313 = vadd.f32 %v124, %v283
    %v314 = vadd.f32 %v125, %v288
    %v315 = vadd.f32 %v126, %v291
    %v316 = vadd.f32 %v127, %v296
    %v317 = vadd.f32 %v128, %v299
    %318 = vst [vmem:[#allocation2] sm:$0xff] %v302
    %319 = vst [vmem:[#allocation2 + $0x8] sm:$0xff] %v303
    %320 = vst [vmem:[#allocation2 + $0x10] sm:$0xff] %v304
    %321 = vst [vmem:[#allocation2 + $0x18] sm:$0xff] %v305
    %322 = vst [vmem:[#allocation2 + $0x20] sm:$0xff] %v306
    %323 = vst [vmem:[#allocation2 + $0x28] sm:$0xff] %v307
    %324 = vst [vmem:[#allocation2 + $0x30] sm:$0xff] %v308
    %325 = vst [vmem:[#allocation2 + $0x38] sm:$0xff] %v309
    %326 = vst [vmem:[#allocation2 + $0x40] sm:$0xff] %v310
    %327 = vst [vmem:[#allocation2 + $0x48] sm:$0xff] %v311
    %328 = vst [vmem:[#allocation2 + $0x50] sm:$0xff] %v312
    %329 = vst [vmem:[#allocation2 + $0x58] sm:$0xff] %v313
    %330 = vst [vmem:[#allocation2 + $0x60] sm:$0xff] %v314
    %331 = vst [vmem:[#allocation2 + $0x68] sm:$0xff] %v315
    %332 = vst [vmem:[#allocation2 + $0x70] sm:$0xff] %v316
    %333 = vst [vmem:[#allocation2 + $0x78] sm:$0xff] %v317
    // Predicated region
    $region50: #{tpu_custom_call.1} parent=1 // pred_check
      %p334 = pneg %p93
    $region51: #{tpu_custom_call.1} parent=1 // pred_check_branch
      %336 = sbr.rel (%p334) target = $region53
    $region52: #{tpu_custom_call.1} parent=1 // pred_region
      %v337 = vld [vmem:[#allocation2] sm:$0xff]
      %v338 = vld [vmem:[#allocation2 + $0x8] sm:$0xff]
      %v339 = vld [vmem:[#allocation2 + $0x10] sm:$0xff]
      %v340 = vld [vmem:[#allocation2 + $0x18] sm:$0xff]
      %v341 = vld [vmem:[#allocation2 + $0x20] sm:$0xff]
      %v342 = vld [vmem:[#allocation2 + $0x28] sm:$0xff]
      %v343 = vld [vmem:[#allocation2 + $0x30] sm:$0xff]
      %v344 = vld [vmem:[#allocation2 + $0x38] sm:$0xff]
      %v345 = vld [vmem:[#allocation2 + $0x40] sm:$0xff]
      %v346 = vld [vmem:[#allocation2 + $0x48] sm:$0xff]
      %v347 = vld [vmem:[#allocation2 + $0x50] sm:$0xff]
      %v348 = vld [vmem:[#allocation2 + $0x58] sm:$0xff]
      %v349 = vld [vmem:[#allocation2 + $0x60] sm:$0xff]
      %v350 = vld [vmem:[#allocation2 + $0x68] sm:$0xff]
      %v351 = vld [vmem:[#allocation2 + $0x70] sm:$0xff]
      %v352 = vld [vmem:[#allocation2 + $0x78] sm:$0xff]
      %v353 = vld [vmem:[#allocation8] sm:$0xf]
      %v354 = vld [vmem:[#allocation8 + $0x4] sm:$0xf]
      %v355 = vld [vmem:[#allocation8 + $0x8] sm:$0xf]
      %v356 = vld [vmem:[#allocation8 + $0xc] sm:$0xf]
      %v357 = vld [vmem:[#allocation8 + $0x10] sm:$0xf]
      %v358 = vld [vmem:[#allocation8 + $0x14] sm:$0xf]
      %v359 = vld [vmem:[#allocation8 + $0x18] sm:$0xf]
      %v360 = vld [vmem:[#allocation8 + $0x1c] sm:$0xf]
      %v361 = vld [vmem:[#allocation8 + $0x20] sm:$0xf]
      %v362 = vld [vmem:[#allocation8 + $0x24] sm:$0xf]
      %v363 = vld [vmem:[#allocation8 + $0x28] sm:$0xf]
      %v364 = vld [vmem:[#allocation8 + $0x2c] sm:$0xf]
      %v365 = vld [vmem:[#allocation8 + $0x30] sm:$0xf]
      %v366 = vld [vmem:[#allocation8 + $0x34] sm:$0xf]
      %v367 = vld [vmem:[#allocation8 + $0x38] sm:$0xf]
      %v368 = vld [vmem:[#allocation8 + $0x3c] sm:$0xf]
      %v369 = vunpack.c.l.bf16 %v353
      %v370 = vunpack.c.l.bf16 %v354
      %v371 = vunpack.c.l.bf16 %v355
      %v372 = vunpack.c.l.bf16 %v356
      %v373 = vunpack.c.l.bf16 %v357
      %v374 = vunpack.c.l.bf16 %v358
      %v375 = vunpack.c.l.bf16 %v359
      %v376 = vunpack.c.l.bf16 %v360
      %v377 = vunpack.c.l.bf16 %v361
      %v378 = vunpack.c.l.bf16 %v362
      %v379 = vunpack.c.l.bf16 %v363
      %v380 = vunpack.c.l.bf16 %v364
      %v381 = vunpack.c.l.bf16 %v365
      %v382 = vunpack.c.l.bf16 %v366
      %v383 = vunpack.c.l.bf16 %v367
      %v384 = vunpack.c.l.bf16 %v368
      %v385 = vld [vmem:[#allocation9] sm:$0xff]
      %v386 = vld [vmem:[#allocation9 + $0x8] sm:$0xff]
      %v387 = vld [vmem:[#allocation9 + $0x10] sm:$0xff]
      %v388 = vld [vmem:[#allocation9 + $0x18] sm:$0xff]
      %v389 = vld [vmem:[#allocation9 + $0x20] sm:$0xff]
      %v390 = vld [vmem:[#allocation9 + $0x28] sm:$0xff]
      %v391 = vld [vmem:[#allocation9 + $0x30] sm:$0xff]
      %v392 = vld [vmem:[#allocation9 + $0x38] sm:$0xff]
      %v393 = vld [vmem:[#allocation9 + $0x40] sm:$0xff]
      %v394 = vld [vmem:[#allocation9 + $0x48] sm:$0xff]
      %v395 = vld [vmem:[#allocation9 + $0x50] sm:$0xff]
      %v396 = vld [vmem:[#allocation9 + $0x58] sm:$0xff]
      %v397 = vld [vmem:[#allocation9 + $0x60] sm:$0xff]
      %v398 = vld [vmem:[#allocation9 + $0x68] sm:$0xff]
      %v399 = vld [vmem:[#allocation9 + $0x70] sm:$0xff]
      %v400 = vld [vmem:[#allocation9 + $0x78] sm:$0xff]
      %v401 = vld [vmem:[#allocation11] sm:$0xff]
      %v402 = vld [vmem:[#allocation11 + $0x8] sm:$0xff]
      %v403 = vld [vmem:[#allocation11 + $0x10] sm:$0xff]
      %v404 = vld [vmem:[#allocation11 + $0x18] sm:$0xff]
      %v405 = vld [vmem:[#allocation11 + $0x20] sm:$0xff]
      %v406 = vld [vmem:[#allocation11 + $0x28] sm:$0xff]
      %v407 = vld [vmem:[#allocation11 + $0x30] sm:$0xff]
      %v408 = vld [vmem:[#allocation11 + $0x38] sm:$0xff]
      %v409 = vld [vmem:[#allocation11 + $0x40] sm:$0xff]
      %v410 = vld [vmem:[#allocation11 + $0x48] sm:$0xff]
      %v411 = vld [vmem:[#allocation11 + $0x50] sm:$0xff]
      %v412 = vld [vmem:[#allocation11 + $0x58] sm:$0xff]
      %v413 = vld [vmem:[#allocation11 + $0x60] sm:$0xff]
      %v414 = vld [vmem:[#allocation11 + $0x68] sm:$0xff]
      %v415 = vld [vmem:[#allocation11 + $0x70] sm:$0xff]
      %v416 = vld [vmem:[#allocation11 + $0x78] sm:$0xff]
      %417 = vmatprep.subr.mxu0 0.0
      %418 = vmatpush1.msra.mxu0 %v416
      %419 = vmatprep.subr.mxu0 0.0
      %420 = vmatpush1.msra.mxu0 %v415
      %421 = vmatprep.subr.mxu0 0.0
      %422 = vmatpush1.msra.mxu0 %v414
      %423 = vmatprep.subr.mxu0 0.0
      %424 = vmatpush1.msra.mxu0 %v413
      %425 = vmatprep.subr.mxu0 0.0
      %426 = vmatpush1.msra.mxu0 %v412
      %427 = vmatprep.subr.mxu0 0.0
      %428 = vmatpush1.msra.mxu0 %v411
      %429 = vmatprep.subr.mxu0 0.0
      %430 = vmatpush1.msra.mxu0 %v410
      %431 = vmatprep.subr.mxu0 0.0
      %432 = vmatpush1.msra.mxu0 %v409
      %433 = vmatprep.subr.mxu0 0.0
      %434 = vmatpush1.msra.mxu0 %v408
      %435 = vmatprep.subr.mxu0 0.0
      %436 = vmatpush1.msra.mxu0 %v407
      %437 = vmatprep.subr.mxu0 0.0
      %438 = vmatpush1.msra.mxu0 %v406
      %439 = vmatprep.subr.mxu0 0.0
      %440 = vmatpush1.msra.mxu0 %v405
      %441 = vmatprep.subr.mxu0 0.0
      %442 = vmatpush1.msra.mxu0 %v404
      %443 = vmatprep.subr.mxu0 0.0
      %444 = vmatpush1.msra.mxu0 %v403
      %445 = vmatprep.subr.mxu0 0.0
      %446 = vmatpush1.msra.mxu0 %v402
      %447 = vmatprep.subr.mxu0 0.0
      %448 = vmatpush1.msra.mxu0 %v401
      %449 = vmatprep.subr.mxu0 0.0
      %450 = vmatpush2.msra.mxu0 0.0
      %451 = vmatprep.subr.mxu0 0.0
      %452 = vmatpush2.msra.mxu0 0.0
      %453 = vmatprep.subr.mxu0 0.0
      %454 = vmatpush2.msra.mxu0 0.0
      %455 = vmatprep.subr.mxu0 0.0
      %456 = vmatpush2.msra.mxu0 0.0
      %457 = vmatprep.subr.mxu0 0.0
      %458 = vmatpush2.msra.mxu0 0.0
      %459 = vmatprep.subr.mxu0 0.0
      %460 = vmatpush2.msra.mxu0 0.0
      %461 = vmatprep.subr.mxu0 0.0
      %462 = vmatpush2.msra.mxu0 0.0
      %463 = vmatprep.subr.mxu0 0.0
      %464 = vmatpush2.msra.mxu0 0.0
      %465 = vmatprep.subr.mxu0 0.0
      %466 = vmatpush2.msra.mxu0 0.0
      %467 = vmatprep.subr.mxu0 0.0
      %468 = vmatpush2.msra.mxu0 0.0
      %469 = vmatprep.subr.mxu0 0.0
      %470 = vmatpush2.msra.mxu0 0.0
      %471 = vmatprep.subr.mxu0 0.0
      %472 = vmatpush2.msra.mxu0 0.0
      %473 = vmatprep.subr.mxu0 0.0
      %474 = vmatpush2.msra.mxu0 0.0
      %475 = vmatprep.subr.mxu0 0.0
      %476 = vmatpush2.msra.mxu0 0.0
      %477 = vmatprep.subr.mxu0 0.0
      %478 = vmatpush2.msra.mxu0 0.0
      %479 = vmatprep.subr.mxu0 0.0
      %480 = vmatpush2.msra.mxu0 0.0
      %481 = vmatprep.mubr.f32.mxu0 0.0
      %482 = vmatmul.mubr.f32.gmra.mxu0 %v369
      %v483 = vpop.f32.mrf.mxu0
      %v484 = vadd.f32 0.0, %v483
      %v485 = vpop.f32.mrf.mxu0
      %486 = vmatprep.mubr.f32.mxu0 0.0
      %487 = vmatmul.mubr.f32.gmra.mxu0 %v370
      %v488 = vpop.f32.mrf.mxu0
      %v489 = vadd.f32 0.0, %v488
      %v490 = vpop.f32.mrf.mxu0
      %491 = vmatprep.mubr.f32.mxu0 0.0
      %492 = vmatmul.mubr.f32.gmra.mxu0 %v371
      %v493 = vpop.f32.mrf.mxu0
      %v494 = vadd.f32 0.0, %v493
      %v495 = vpop.f32.mrf.mxu0
      %496 = vmatprep.mubr.f32.mxu0 0.0
      %497 = vmatmul.mubr.f32.gmra.mxu0 %v372
      %v498 = vpop.f32.mrf.mxu0
      %v499 = vadd.f32 0.0, %v498
      %v500 = vpop.f32.mrf.mxu0
      %501 = vmatprep.mubr.f32.mxu0 0.0
      %502 = vmatmul.mubr.f32.gmra.mxu0 %v373
      %v503 = vpop.f32.mrf.mxu0
      %v504 = vadd.f32 0.0, %v503
      %v505 = vpop.f32.mrf.mxu0
      %506 = vmatprep.mubr.f32.mxu0 0.0
      %507 = vmatmul.mubr.f32.gmra.mxu0 %v374
      %v508 = vpop.f32.mrf.mxu0
      %v509 = vadd.f32 0.0, %v508
      %v510 = vpop.f32.mrf.mxu0
      %511 = vmatprep.mubr.f32.mxu0 0.0
      %512 = vmatmul.mubr.f32.gmra.mxu0 %v375
      %v513 = vpop.f32.mrf.mxu0
      %v514 = vadd.f32 0.0, %v513
      %v515 = vpop.f32.mrf.mxu0
      %516 = vmatprep.mubr.f32.mxu0 0.0
      %517 = vmatmul.mubr.f32.gmra.mxu0 %v376
      %v518 = vpop.f32.mrf.mxu0
      %v519 = vadd.f32 0.0, %v518
      %v520 = vpop.f32.mrf.mxu0
      %521 = vmatprep.mubr.f32.mxu0 0.0
      %522 = vmatmul.mubr.f32.gmra.mxu0 %v377
      %v523 = vpop.f32.mrf.mxu0
      %v524 = vadd.f32 0.0, %v523
      %v525 = vpop.f32.mrf.mxu0
      %526 = vmatprep.mubr.f32.mxu0 0.0
      %527 = vmatmul.mubr.f32.gmra.mxu0 %v378
      %v528 = vpop.f32.mrf.mxu0
      %v529 = vadd.f32 0.0, %v528
      %v530 = vpop.f32.mrf.mxu0
      %531 = vmatprep.mubr.f32.mxu0 0.0
      %532 = vmatmul.mubr.f32.gmra.mxu0 %v379
      %v533 = vpop.f32.mrf.mxu0
      %v534 = vadd.f32 0.0, %v533
      %v535 = vpop.f32.mrf.mxu0
      %536 = vmatprep.mubr.f32.mxu0 0.0
      %537 = vmatmul.mubr.f32.gmra.mxu0 %v380
      %v538 = vpop.f32.mrf.mxu0
      %v539 = vadd.f32 0.0, %v538
      %v540 = vpop.f32.mrf.mxu0
      %541 = vmatprep.mubr.f32.mxu0 0.0
      %542 = vmatmul.mubr.f32.gmra.mxu0 %v381
      %v543 = vpop.f32.mrf.mxu0
      %v544 = vadd.f32 0.0, %v543
      %v545 = vpop.f32.mrf.mxu0
      %546 = vmatprep.mubr.f32.mxu0 0.0
      %547 = vmatmul.mubr.f32.gmra.mxu0 %v382
      %v548 = vpop.f32.mrf.mxu0
      %v549 = vadd.f32 0.0, %v548
      %v550 = vpop.f32.mrf.mxu0
      %551 = vmatprep.mubr.f32.mxu0 0.0
      %552 = vmatmul.mubr.f32.gmra.mxu0 %v383
      %v553 = vpop.f32.mrf.mxu0
      %v554 = vadd.f32 0.0, %v553
      %v555 = vpop.f32.mrf.mxu0
      %556 = vmatprep.mubr.f32.mxu0 0.0
      %557 = vmatmul.mubr.f32.gmra.mxu0 %v384
      %v558 = vpop.f32.mrf.mxu0
      %v559 = vadd.f32 0.0, %v558
      %v560 = vpop.f32.mrf.mxu0
      %561 = vdwg.mxu0
      %562 = vmatprep.subr.mxu0 0.0
      %563 = vmatpush1.msra.mxu0 %v400
      %564 = vmatprep.subr.mxu0 0.0
      %565 = vmatpush1.msra.mxu0 %v399
      %566 = vmatprep.subr.mxu0 0.0
      %567 = vmatpush1.msra.mxu0 %v398
      %568 = vmatprep.subr.mxu0 0.0
      %569 = vmatpush1.msra.mxu0 %v397
      %570 = vmatprep.subr.mxu0 0.0
      %571 = vmatpush1.msra.mxu0 %v396
      %572 = vmatprep.subr.mxu0 0.0
      %573 = vmatpush1.msra.mxu0 %v395
      %574 = vmatprep.subr.mxu0 0.0
      %575 = vmatpush1.msra.mxu0 %v394
      %576 = vmatprep.subr.mxu0 0.0
      %577 = vmatpush1.msra.mxu0 %v393
      %578 = vmatprep.subr.mxu0 0.0
      %579 = vmatpush1.msra.mxu0 %v392
      %580 = vmatprep.subr.mxu0 0.0
      %581 = vmatpush1.msra.mxu0 %v391
      %582 = vmatprep.subr.mxu0 0.0
      %583 = vmatpush1.msra.mxu0 %v390
      %584 = vmatprep.subr.mxu0 0.0
      %585 = vmatpush1.msra.mxu0 %v389
      %586 = vmatprep.subr.mxu0 0.0
      %587 = vmatpush1.msra.mxu0 %v388
      %588 = vmatprep.subr.mxu0 0.0
      %589 = vmatpush1.msra.mxu0 %v387
      %590 = vmatprep.subr.mxu0 0.0
      %591 = vmatpush1.msra.mxu0 %v386
      %592 = vmatprep.subr.mxu0 0.0
      %593 = vmatpush1.msra.mxu0 %v385
      %594 = vmatprep.subr.mxu0 0.0
      %595 = vmatpush2.msra.mxu0 0.0
      %596 = vmatprep.subr.mxu0 0.0
      %597 = vmatpush2.msra.mxu0 0.0
      %598 = vmatprep.subr.mxu0 0.0
      %599 = vmatpush2.msra.mxu0 0.0
      %600 = vmatprep.subr.mxu0 0.0
      %601 = vmatpush2.msra.mxu0 0.0
      %602 = vmatprep.subr.mxu0 0.0
      %603 = vmatpush2.msra.mxu0 0.0
      %604 = vmatprep.subr.mxu0 0.0
      %605 = vmatpush2.msra.mxu0 0.0
      %606 = vmatprep.subr.mxu0 0.0
      %607 = vmatpush2.msra.mxu0 0.0
      %608 = vmatprep.subr.mxu0 0.0
      %609 = vmatpush2.msra.mxu0 0.0
      %610 = vmatprep.subr.mxu0 0.0
      %611 = vmatpush2.msra.mxu0 0.0
      %612 = vmatprep.subr.mxu0 0.0
      %613 = vmatpush2.msra.mxu0 0.0
      %614 = vmatprep.subr.mxu0 0.0
      %615 = vmatpush2.msra.mxu0 0.0
      %616 = vmatprep.subr.mxu0 0.0
      %617 = vmatpush2.msra.mxu0 0.0
      %618 = vmatprep.subr.mxu0 0.0
      %619 = vmatpush2.msra.mxu0 0.0
      %620 = vmatprep.subr.mxu0 0.0
      %621 = vmatpush2.msra.mxu0 0.0
      %622 = vmatprep.subr.mxu0 0.0
      %623 = vmatpush2.msra.mxu0 0.0
      %624 = vmatprep.subr.mxu0 0.0
      %625 = vmatpush2.msra.mxu0 0.0
      %626 = vmatprep.mubr.f32.mxu0 0.0
      %627 = vmatmul.mubr.f32.gmra.mxu0 %v337
      %v628 = vpop.f32.mrf.mxu0
      %v629 = vadd.f32 %v484, %v628
      %v630 = vpop.f32.mrf.mxu0
      %631 = vmatprep.mubr.f32.mxu0 0.0
      %632 = vmatmul.mubr.f32.gmra.mxu0 %v338
      %v633 = vpop.f32.mrf.mxu0
      %v634 = vadd.f32 %v489, %v633
      %v635 = vpop.f32.mrf.mxu0
      %636 = vmatprep.mubr.f32.mxu0 0.0
      %637 = vmatmul.mubr.f32.gmra.mxu0 %v339
      %v638 = vpop.f32.mrf.mxu0
      %v639 = vadd.f32 %v494, %v638
      %v640 = vpop.f32.mrf.mxu0
      %641 = vmatprep.mubr.f32.mxu0 0.0
      %642 = vmatmul.mubr.f32.gmra.mxu0 %v340
      %v643 = vpop.f32.mrf.mxu0
      %v644 = vadd.f32 %v499, %v643
      %v645 = vpop.f32.mrf.mxu0
      %646 = vmatprep.mubr.f32.mxu0 0.0
      %647 = vmatmul.mubr.f32.gmra.mxu0 %v341
      %v648 = vpop.f32.mrf.mxu0
      %v649 = vadd.f32 %v504, %v648
      %v650 = vpop.f32.mrf.mxu0
      %651 = vmatprep.mubr.f32.mxu0 0.0
      %652 = vmatmul.mubr.f32.gmra.mxu0 %v342
      %v653 = vpop.f32.mrf.mxu0
      %v654 = vadd.f32 %v509, %v653
      %v655 = vpop.f32.mrf.mxu0
      %656 = vmatprep.mubr.f32.mxu0 0.0
      %657 = vmatmul.mubr.f32.gmra.mxu0 %v343
      %v658 = vpop.f32.mrf.mxu0
      %v659 = vadd.f32 %v514, %v658
      %v660 = vpop.f32.mrf.mxu0
      %661 = vmatprep.mubr.f32.mxu0 0.0
      %662 = vmatmul.mubr.f32.gmra.mxu0 %v344
      %v663 = vpop.f32.mrf.mxu0
      %v664 = vadd.f32 %v519, %v663
      %v665 = vpop.f32.mrf.mxu0
      %666 = vmatprep.mubr.f32.mxu0 0.0
      %667 = vmatmul.mubr.f32.gmra.mxu0 %v345
      %v668 = vpop.f32.mrf.mxu0
      %v669 = vadd.f32 %v524, %v668
      %v670 = vpop.f32.mrf.mxu0
      %671 = vmatprep.mubr.f32.mxu0 0.0
      %672 = vmatmul.mubr.f32.gmra.mxu0 %v346
      %v673 = vpop.f32.mrf.mxu0
      %v674 = vadd.f32 %v529, %v673
      %v675 = vpop.f32.mrf.mxu0
      %676 = vmatprep.mubr.f32.mxu0 0.0
      %677 = vmatmul.mubr.f32.gmra.mxu0 %v347
      %v678 = vpop.f32.mrf.mxu0
      %v679 = vadd.f32 %v534, %v678
      %v680 = vpop.f32.mrf.mxu0
      %681 = vmatprep.mubr.f32.mxu0 0.0
      %682 = vmatmul.mubr.f32.gmra.mxu0 %v348
      %v683 = vpop.f32.mrf.mxu0
      %v684 = vadd.f32 %v539, %v683
      %v685 = vpop.f32.mrf.mxu0
      %686 = vmatprep.mubr.f32.mxu0 0.0
      %687 = vmatmul.mubr.f32.gmra.mxu0 %v349
      %v688 = vpop.f32.mrf.mxu0
      %v689 = vadd.f32 %v544, %v688
      %v690 = vpop.f32.mrf.mxu0
      %691 = vmatprep.mubr.f32.mxu0 0.0
      %692 = vmatmul.mubr.f32.gmra.mxu0 %v350
      %v693 = vpop.f32.mrf.mxu0
      %v694 = vadd.f32 %v549, %v693
      %v695 = vpop.f32.mrf.mxu0
      %696 = vmatprep.mubr.f32.mxu0 0.0
      %697 = vmatmul.mubr.f32.gmra.mxu0 %v351
      %v698 = vpop.f32.mrf.mxu0
      %v699 = vadd.f32 %v554, %v698
      %v700 = vpop.f32.mrf.mxu0
      %701 = vmatprep.mubr.f32.mxu0 0.0
      %702 = vmatmul.mubr.f32.gmra.mxu0 %v352
      %v703 = vpop.f32.mrf.mxu0
      %v704 = vadd.f32 %v559, %v703
      %v705 = vpop.f32.mrf.mxu0
      %706 = vdwg.mxu0
      %v707 = vld [vmem:[%s5] sm:$0x1]
      %v709 = vlaneseq
      %v710 = vshrl.u32 %v709, 7
      %v711 = vsub.s32 0, %v710
      %v712 = vrot.slane %v707, %v711
      %v714 = vadd.f32 %v629, %v712
      %v715 = vadd.f32 %v634, %v712
      %v716 = vadd.f32 %v639, %v712
      %v717 = vadd.f32 %v644, %v712
      %v718 = vadd.f32 %v649, %v712
      %v719 = vadd.f32 %v654, %v712
      %v720 = vadd.f32 %v659, %v712
      %v721 = vadd.f32 %v664, %v712
      %v722 = vadd.f32 %v669, %v712
      %v723 = vadd.f32 %v674, %v712
      %v724 = vadd.f32 %v679, %v712
      %v725 = vadd.f32 %v684, %v712
      %v726 = vadd.f32 %v689, %v712
      %v727 = vadd.f32 %v694, %v712
      %v728 = vadd.f32 %v699, %v712
      %v729 = vadd.f32 %v704, %v712
      %v730 = vmul.f32 %v714, %v714
      %v731 = vmul.f32 %v715, %v715
      %v732 = vmul.f32 %v716, %v716
      %v733 = vmul.f32 %v717, %v717
      %v734 = vmul.f32 %v718, %v718
      %v735 = vmul.f32 %v719, %v719
      %v736 = vmul.f32 %v720, %v720
      %v737 = vmul.f32 %v721, %v721
      %v738 = vmul.f32 %v722, %v722
      %v739 = vmul.f32 %v723, %v723
      %v740 = vmul.f32 %v724, %v724
      %v741 = vmul.f32 %v725, %v725
      %v742 = vmul.f32 %v726, %v726
      %v743 = vmul.f32 %v727, %v727
      %v744 = vmul.f32 %v728, %v728
      %v745 = vmul.f32 %v729, %v729
      %746 = vadd.xlane.f32.xlu0 %v730
      %v747 = vpop.xlane.xlu0 %746
      %748 = vadd.xlane.f32.xlu0 %v731
      %v749 = vpop.xlane.xlu0 %748
      %750 = vadd.xlane.f32.xlu0 %v732
      %v751 = vpop.xlane.xlu0 %750
      %752 = vadd.xlane.f32.xlu0 %v733
      %v753 = vpop.xlane.xlu0 %752
      %754 = vadd.xlane.f32.xlu0 %v734
      %v755 = vpop.xlane.xlu0 %754
      %756 = vadd.xlane.f32.xlu0 %v735
      %v757 = vpop.xlane.xlu0 %756
      %758 = vadd.xlane.f32.xlu0 %v736
      %v759 = vpop.xlane.xlu0 %758
      %760 = vadd.xlane.f32.xlu0 %v737
      %v761 = vpop.xlane.xlu0 %760
      %762 = vadd.xlane.f32.xlu0 %v738
      %v763 = vpop.xlane.xlu0 %762
      %764 = vadd.xlane.f32.xlu0 %v739
      %v765 = vpop.xlane.xlu0 %764
      %766 = vadd.xlane.f32.xlu0 %v740
      %v767 = vpop.xlane.xlu0 %766
      %768 = vadd.xlane.f32.xlu0 %v741
      %v769 = vpop.xlane.xlu0 %768
      %770 = vadd.xlane.f32.xlu0 %v742
      %v771 = vpop.xlane.xlu0 %770
      %772 = vadd.xlane.f32.xlu0 %v743
      %v773 = vpop.xlane.xlu0 %772
      %774 = vadd.xlane.f32.xlu0 %v744
      %v775 = vpop.xlane.xlu0 %774
      %776 = vadd.xlane.f32.xlu0 %v745
      %v777 = vpop.xlane.xlu0 %776
      %v778 = vrsqrt.pop %v747
      %v779 = vrsqrt.pop %v749
      %v780 = vrsqrt.pop %v751
      %v781 = vrsqrt.pop %v753
      %v782 = vrsqrt.pop %v755
      %v783 = vrsqrt.pop %v757
      %v784 = vrsqrt.pop %v759
      %v785 = vrsqrt.pop %v761
      %v786 = vrsqrt.pop %v763
      %v787 = vrsqrt.pop %v765
      %v788 = vrsqrt.pop %v767
      %v789 = vrsqrt.pop %v769
      %v790 = vrsqrt.pop %v771
      %v791 = vrsqrt.pop %v773
      %v792 = vrsqrt.pop %v775
      %v793 = vrsqrt.pop %v777
      %v794 = vmin.f32 %v778, 1e+12
      %v795 = vmin.f32 %v779, 1e+12
      %v796 = vmin.f32 %v780, 1e+12
      %v797 = vmin.f32 %v781, 1e+12
      %v798 = vmin.f32 %v782, 1e+12
      %v799 = vmin.f32 %v783, 1e+12
      %v800 = vmin.f32 %v784, 1e+12
      %v801 = vmin.f32 %v785, 1e+12
      %v802 = vmin.f32 %v786, 1e+12
      %v803 = vmin.f32 %v787, 1e+12
      %v804 = vmin.f32 %v788, 1e+12
      %v805 = vmin.f32 %v789, 1e+12
      %v806 = vmin.f32 %v790, 1e+12
      %v807 = vmin.f32 %v791, 1e+12
      %v808 = vmin.f32 %v792, 1e+12
      %v809 = vmin.f32 %v793, 1e+12
      %v810 = vmul.f32 %v714, %v794
      %v811 = vmul.f32 %v715, %v795
      %v812 = vmul.f32 %v716, %v796
      %v813 = vmul.f32 %v717, %v797
      %v814 = vmul.f32 %v718, %v798
      %v815 = vmul.f32 %v719, %v799
      %v816 = vmul.f32 %v720, %v800
      %v817 = vmul.f32 %v721, %v801
      %v818 = vmul.f32 %v722, %v802
      %v819 = vmul.f32 %v723, %v803
      %v820 = vmul.f32 %v724, %v804
      %v821 = vmul.f32 %v725, %v805
      %v822 = vmul.f32 %v726, %v806
      %v823 = vmul.f32 %v727, %v807
      %v824 = vmul.f32 %v728, %v808
      %v825 = vmul.f32 %v729, %v809
      %v826 = vmax.f32 %v810, 0.0
      %v827 = vmax.f32 %v811, 0.0
      %v828 = vmax.f32 %v812, 0.0
      %v829 = vmax.f32 %v813, 0.0
      %v830 = vmax.f32 %v814, 0.0
      %v831 = vmax.f32 %v815, 0.0
      %v832 = vmax.f32 %v816, 0.0
      %v833 = vmax.f32 %v817, 0.0
      %v834 = vmax.f32 %v818, 0.0
      %v835 = vmax.f32 %v819, 0.0
      %v836 = vmax.f32 %v820, 0.0
      %v837 = vmax.f32 %v821, 0.0
      %v838 = vmax.f32 %v822, 0.0
      %v839 = vmax.f32 %v823, 0.0
      %v840 = vmax.f32 %v824, 0.0
      %v841 = vmax.f32 %v825, 0.0
      %v842 = vpack.c.bf16 %v827, %v826
      %v843 = vpack.c.bf16 %v829, %v828
      %v844 = vpack.c.bf16 %v831, %v830
      %v845 = vpack.c.bf16 %v833, %v832
      %v846 = vpack.c.bf16 %v835, %v834
      %v847 = vpack.c.bf16 %v837, %v836
      %v848 = vpack.c.bf16 %v839, %v838
      %v849 = vpack.c.bf16 %v841, %v840
      %v858 = vunpack.c.l.b16 %v842
      %v859 = vunpack.c.h.b16 %v842
      %v860 = vunpack.c.l.b16 %v843
      %v861 = vunpack.c.h.b16 %v843
      %v862 = vunpack.c.l.b16 %v844
      %v863 = vunpack.c.h.b16 %v844
      %v864 = vunpack.c.l.b16 %v845
      %v865 = vunpack.c.h.b16 %v845
      %v866 = vunpack.c.l.b16 %v846
      %v867 = vunpack.c.h.b16 %v846
      %v868 = vunpack.c.l.b16 %v847
      %v869 = vunpack.c.h.b16 %v847
      %v870 = vunpack.c.l.b16 %v848
      %v871 = vunpack.c.h.b16 %v848
      %v872 = vunpack.c.l.b16 %v849
      %v873 = vunpack.c.h.b16 %v849
      %v874 = vpack.c.b16 %v858, %v858
      %v875 = vpack.c.b16 %v859, %v859
      %v876 = vpack.c.b16 %v860, %v860
      %v877 = vpack.c.b16 %v861, %v861
      %v878 = vpack.c.b16 %v862, %v862
      %v879 = vpack.c.b16 %v863, %v863
      %v880 = vpack.c.b16 %v864, %v864
      %v881 = vpack.c.b16 %v865, %v865
      %v882 = vpack.c.b16 %v866, %v866
      %v883 = vpack.c.b16 %v867, %v867
      %v884 = vpack.c.b16 %v868, %v868
      %v885 = vpack.c.b16 %v869, %v869
      %v886 = vpack.c.b16 %v870, %v870
      %v887 = vpack.c.b16 %v871, %v871
      %v888 = vpack.c.b16 %v872, %v872
      %v889 = vpack.c.b16 %v873, %v873
      %906 = vst [vmem:[#allocation12] sm:$0xf] %v874
      %907 = vst [vmem:[#allocation12 + $0x4] sm:$0xf] %v875
      %908 = vst [vmem:[#allocation12 + $0x8] sm:$0xf] %v876
      %909 = vst [vmem:[#allocation12 + $0xc] sm:$0xf] %v877
      %910 = vst [vmem:[#allocation12 + $0x10] sm:$0xf] %v878
      %911 = vst [vmem:[#allocation12 + $0x14] sm:$0xf] %v879
      %912 = vst [vmem:[#allocation12 + $0x18] sm:$0xf] %v880
      %913 = vst [vmem:[#allocation12 + $0x1c] sm:$0xf] %v881
      %914 = vst [vmem:[#allocation12 + $0x20] sm:$0xf] %v882
      %915 = vst [vmem:[#allocation12 + $0x24] sm:$0xf] %v883
      %916 = vst [vmem:[#allocation12 + $0x28] sm:$0xf] %v884
      %917 = vst [vmem:[#allocation12 + $0x2c] sm:$0xf] %v885
      %918 = vst [vmem:[#allocation12 + $0x30] sm:$0xf] %v886
      %919 = vst [vmem:[#allocation12 + $0x34] sm:$0xf] %v887
      %920 = vst [vmem:[#allocation12 + $0x38] sm:$0xf] %v888
      %921 = vst [vmem:[#allocation12 + $0x3c] sm:$0xf] %v889
    $region53: #{tpu_custom_call.1} parent=1 // pred_fallthru
      _
    // Predicated region
    $region54: #{tpu_custom_call.1} parent=1 // pred_check
      _
    $region55: #{tpu_custom_call.1} parent=1 // pred_check_branch
      %923 = sbr.rel (0) target = $region57
    $region56: #{tpu_custom_call.1} parent=1 // pred_region
      %s925 = ssub.s32 1024, 1024
      %926 = vsyncadd [#allocation5], %s925
      %s927 = sshll.u32 [#allocation12], 4
      %s928 = int_to_ptr.vmem [resolvable:$true] %s927
      %933 = dma.vmem_to_hbm [thread:$0]  %s928, 1024, %s6, [#allocation5], 64, 64, 4
    $region57: #{tpu_custom_call.1} parent=1 // pred_fallthru
      _
    // Predicated region
    $region58: #{tpu_custom_call.1} parent=1 // pred_check
      _
    $region59: #{tpu_custom_call.1} parent=1 // pred_check_branch
      %935 = sbr.rel (0) target = $region61
    $region60: #{tpu_custom_call.1} parent=1 // pred_region
      %936 = dma.done [#allocation5], 1024
    $region61: #{tpu_custom_call.1} parent=1 // pred_fallthru
      _
    %937 = vsyncpa [#allocation4], 1
    %938 = vsyncpa [#allocation7], 1
    %939 = vsyncpa [#allocation10], 1
    %940 = vsyncpa [#allocation5], 1

</llo_original>
